<compile_context>
chip_gen: v6e
topology: v6e:2x2x1
jax: 0.10.0
libtpu: 0.0.40
codegen_flags: <defaults>
</compile_context>

<pallas_src>
import math

import jax
import jax.numpy as jnp
from jax.experimental import pallas as pl
from jax.experimental.pallas import tpu as pltpu


def _copy_kernel(x_ref, o_ref):
    # Pure lane-dense tile copy; intentionally trivial (mem-bound op).
    o_ref[...] = x_ref[...]


def _vmem_budgets():
    """(pipeline_budget_bytes, vmem_limit_bytes) sized per TPU generation."""
    try:
        cap = int(getattr(pltpu.get_tpu_info(), "vmem_capacity_bytes", 64 << 20))
    except Exception:
        cap = 64 << 20  # conservative default: v7x per-TensorCore VMEM
    # 2 input + 2 output double buffers must fit with headroom; cap at 48 MiB
    # so a v5e/v6e-tuned tile does not overflow v7x's 64 MiB VMEM.
    pipeline_budget = min(cap // 2, 48 << 20)
    vmem_limit = min(pipeline_budget + (8 << 20), (cap * 3) // 4)
    return pipeline_budget, int(vmem_limit)


def _flatten_alias(x_flat, B, N, itemsize):
    # Output buffer aliases the input buffer (bit-identical data); only one
    # tiny tile is streamed through VMEM so the kernel has a defined write —
    # the rest of the output already holds the flattened bytes.
    tb = min(B, 8)
    tn = min(N, 128)
    return pl.pallas_call(
        _copy_kernel,
        out_shape=jax.ShapeDtypeStruct((B, N), x_flat.dtype),
        grid=(1,),
        in_specs=[pl.BlockSpec((tb, tn), lambda i: (0, 0))],
        out_specs=pl.BlockSpec((tb, tn), lambda i: (0, 0)),
        input_output_aliases={0: 0},
        compiler_params=pltpu.CompilerParams(
            dimension_semantics=("arbitrary",),
        ),
        cost_estimate=pl.CostEstimate(
            flops=0, transcendentals=0,
            bytes_accessed=2 * tb * tn * itemsize),
    )(x_flat)


def _flatten_copy(x_flat, B, N, itemsize):
    # Full-copy fallback for when buffer donation/aliasing is not wanted.
    total = B * N
    pipeline_budget, vmem_limit = _vmem_budgets()

    # Lane-dense re-blocking: if B is small or N is not 128-aligned, view the
    # flat buffer as (rows, cols) with cols a multiple of 128.  Element order
    # is unchanged, so it is still a straight memcpy.
    rows, cols = B, N
    if B < 8 or N % 128 != 0:
        for cand in (8192, 4096, 2048, 1024, 512, 256, 128):
            if total % cand == 0:
                rows, cols = total // cand, cand
                break
    view = x_flat if (rows, cols) == (B, N) else x_flat.reshape(rows, cols)

    # Prefer full-width (tb, cols) tiles: one long contiguous DMA per step.
    per_row = 4 * cols * itemsize               # 2 in + 2 out double buffers
    max_rows = max(1, pipeline_budget // per_row)
    if rows <= max_rows:
        tb, tn = rows, cols
        if rows >= 16:
            # Split into >=2 "parallel" programs so v7x can use both TCs.
            tb = max(8, ((rows // 2) // 8) * 8)
    elif max_rows >= 8:
        tb, tn = (max_rows // 8) * 8, cols
    else:
        # Even a single 8-row slab is too wide: tile the lane dim as well.
        tb = min(rows, 8)
        tn = max(128, (pipeline_budget // (4 * tb * itemsize) // 128) * 128)
        tn = min(tn, cols)

    grid = (pl.cdiv(rows, tb), pl.cdiv(cols, tn))
    out = pl.pallas_call(
        _copy_kernel,
        out_shape=jax.ShapeDtypeStruct((rows, cols), x_flat.dtype),
        grid=grid,
        in_specs=[pl.BlockSpec((tb, tn), lambda i, j: (i, j))],
        out_specs=pl.BlockSpec((tb, tn), lambda i, j: (i, j)),
        compiler_params=pltpu.CompilerParams(
            dimension_semantics=("parallel", "parallel"),
            vmem_limit_bytes=vmem_limit,
        ),
        cost_estimate=pl.CostEstimate(
            flops=0, transcendentals=0,
            bytes_accessed=2 * total * itemsize),
    )(view)
    return out.reshape(B, N) if (rows, cols) != (B, N) else out


def flatten(x: jax.Array, *, alias: bool = True) -> jax.Array:
    """Pallas equivalent of torch `x.view(x.size(0), -1)`."""
    B = x.shape[0]
    N = math.prod(x.shape[1:])
    # Metadata-only for a contiguous row-major array; same element order as
    # torch .view(B, -1).
    x_flat = x.reshape(B, N)
    itemsize = jnp.dtype(x.dtype).itemsize
    if alias:
        return _flatten_alias(x_flat, B, N, itemsize)
    return _flatten_copy(x_flat, B, N, itemsize)


if __name__ == "__main__":
    key = jax.random.PRNGKey(0)
    # Small conv-feature-map-like shape: (B, C, H, W)
    x = jax.random.normal(key, (2, 4, 16, 16), dtype=jnp.float32)
    y_ref = x.reshape(x.shape[0], -1)   # reference: torch x.view(B, -1)

    # Default (aliased, near-zero extra HBM traffic) path.
    y = jax.block_until_ready(flatten(x))
    assert y.shape == y_ref.shape, (y.shape, y_ref.shape)
    assert y.dtype == y_ref.dtype
    assert jnp.array_equal(y, y_ref), "alias path mismatch vs reference reshape"

    # Explicit-copy fallback path (used when buffer donation is unavailable).
    y2 = jax.block_until_ready(flatten(x, alias=False))
    assert jnp.array_equal(y2, y_ref), "copy path mismatch vs reference reshape"

    print("KERNEL_OK")
</pallas_src>

<mosaic_0001>
module attributes {stable_mosaic.version = 11 : i64} {
  func.func @_copy_kernel(%arg0: i32, %arg1: memref<2x128xf32, #tpu.memory_space<vmem>>, %arg2: memref<2x128xf32, #tpu.memory_space<vmem>>) attributes {dimension_semantics = [#tpu.dimension_semantics<arbitrary>], iteration_bounds = array<i64: 1>, scalar_prefetch = 0 : i64, scratch_operands = 0 : i64, tpu.core_type = #tpu.core_type<tc>, window_params = [{transform_indices = @transform_0, window_bounds = array<i64: 2, 128>}, {transform_indices = @transform_1, window_bounds = array<i64: 2, 128>}]} {
    %c0 = arith.constant 0 : index
    %c0_0 = arith.constant 0 : index
    %0 = vector.load %arg1[%c0, %c0_0] : memref<2x128xf32, #tpu.memory_space<vmem>>, vector<2x128xf32>
    %c0_1 = arith.constant 0 : index
    %c0_2 = arith.constant 0 : index
    %1 = vector.load %arg2[%c0_1, %c0_2] : memref<2x128xf32, #tpu.memory_space<vmem>>, vector<2x128xf32>
    tpu.vector_store %arg2[%c0_1, %c0_2], %0 {strides = array<i32>} : memref<2x128xf32, #tpu.memory_space<vmem>>, vector<2x128xf32>,
    return
  }
  func.func @transform_0(%arg0: i32) -> (i32, i32) {
    %c0_i32 = arith.constant 0 : i32
    %c0_i32_0 = arith.constant 0 : i32
    %c0_i32_1 = arith.constant 0 : i32
    return %c0_i32, %c0_i32_0 : i32, i32
  }
  func.func @transform_1(%arg0: i32) -> (i32, i32) {
    %c0_i32 = arith.constant 0 : i32
    %c0_i32_0 = arith.constant 0 : i32
    %c0_i32_1 = arith.constant 0 : i32
    return %c0_i32, %c0_i32_0 : i32, i32
  }
}

</mosaic_0001>

<llo_original>
// kernel: tpu_custom_call.1
$region0: #{tpu_custom_call.1}
  #allocation0 [shape = 'u32[]', space=smem, size = 0x4, offset = 0x4, fixed_abs, tag = 'smem constant byte address 0x4 - core index']
  #allocation1 [shape = 'u32[144,128]{1,0:T(1,128)}', space=vmem, size = 0x12000, scoped, tag = 'internal scratch']
  %s0 = inlined_call_operand.hbm [shape: f32[2,1024], index: 0, kind: input, shape index: {}, may-alias: {0,1}]
  %s1 = inlined_call_operand.hbm [shape: f32[2,1024], index: 1, kind: output, shape index: {}, may-alias: {0,1}]
  %s2 = sld [smem:[#allocation0]]
  $region18: #{tpu_custom_call.1} parent=0
    _
  %s4 = ssub.s32 1, %s2
  %s5 = scalar_select 0, %s4, %s2
  $region1: #{tpu_custom_call.1} parent=0
    #allocation2 [shape = 'u8[1024]{0}', space=vmem, size = 0x400, scoped, tag = 'input window, operand 0, single buffered']
    #allocation3 [shape = 's32[1]{0}', space=sflag, size = 0x4, scoped, tag = 'scoped memory for tpu_custom_call.1']
    #allocation4 [shape = 's32[1]{0}', space=sflag, size = 0x4, scoped, tag = 'scoped memory for tpu_custom_call.1']
    #allocation5 [shape = 'u8[1024]{0}', space=vmem, size = 0x400, scoped, tag = 'output window, operand 0, single buffered']
    %6 = vsyncpa [#allocation3], 0
    %7 = vsyncpa [#allocation4], 0
    // Predicated region
    $region2: #{tpu_custom_call.1} parent=1 // pred_check
      _
    $region3: #{tpu_custom_call.1} parent=1 // pred_check_branch
      %9 = sbr.rel (0) target = $region5
    $region4: #{tpu_custom_call.1} parent=1 // pred_region
      %s11 = ssub.s32 32, 32
      %12 = vsyncadd [#allocation3], %s11
      %s14 = sshll.u32 [#allocation2], 4
      %s15 = int_to_ptr.vmem [resolvable:$true] %s14
      %17 = dma.hbm_to_vmem [thread:$0]  %s0, 32, %s15, [#allocation3]
    $region5: #{tpu_custom_call.1} parent=1 // pred_fallthru
      _
    // Predicated region
    $region6: #{tpu_custom_call.1} parent=1 // pred_check
      _
    $region7: #{tpu_custom_call.1} parent=1 // pred_check_branch
      %19 = sbr.rel (0) target = $region9
    $region8: #{tpu_custom_call.1} parent=1 // pred_region
      %20 = dma.done [#allocation3], 32
    $region9: #{tpu_custom_call.1} parent=1 // pred_fallthru
      _
    %v21 = vld [vmem:[#allocation2] sm:$0x3]
    %22 = vst [vmem:[#allocation5] sm:$0x3] %v21
    // Predicated region
    $region10: #{tpu_custom_call.1} parent=1 // pred_check
      _
    $region11: #{tpu_custom_call.1} parent=1 // pred_check_branch
      %24 = sbr.rel (0) target = $region13
    $region12: #{tpu_custom_call.1} parent=1 // pred_region
      %s26 = ssub.s32 32, 32
      %27 = vsyncadd [#allocation4], %s26
      %s29 = sshll.u32 [#allocation5], 4
      %s30 = int_to_ptr.vmem [resolvable:$true] %s29
      %32 = dma.vmem_to_hbm [thread:$0]  %s30, 32, %s1, [#allocation4]
    $region13: #{tpu_custom_call.1} parent=1 // pred_fallthru
      _
    // Predicated region
    $region14: #{tpu_custom_call.1} parent=1 // pred_check
      _
    $region15: #{tpu_custom_call.1} parent=1 // pred_check_branch
      %34 = sbr.rel (0) target = $region17
    $region16: #{tpu_custom_call.1} parent=1 // pred_region
      %35 = dma.done [#allocation4], 32
    $region17: #{tpu_custom_call.1} parent=1 // pred_fallthru
      _
    %36 = vsyncpa [#allocation3], 1
    %37 = vsyncpa [#allocation4], 1

</llo_original>
